<compile_context>
chip_gen: v7x
topology: tpu7x:2x2x1
jax: 0.10.0
libtpu: 0.0.40
codegen_flags: <defaults>
</compile_context>

<pallas_src>
import functools
import numpy as np

import jax
import jax.numpy as jnp
from jax.experimental import pallas as pl
from jax.experimental.pallas import tpu as pltpu


# ----------------------------------------------------------------------------
# Pallas kernels
# ----------------------------------------------------------------------------
def _matmul_bias_kernel(x_ref, w_ref, b_ref, o_ref):
    o_ref[...] = (
        jnp.dot(x_ref[...], w_ref[...], preferred_element_type=jnp.float32)
        + b_ref[...]
    )


def matmul_bias(x, w, b, *, tm=256):
    """x: (M, K) @ w: (K, N) + b: (1, N) -> (M, N), float32.

    M is tiled over a 1-D "parallel" grid (rows zero-padded to the tile size)
    so the same kernel scales past VMEM when B*num_patches grows.
    """
    M, K = x.shape
    N = w.shape[1]
    m_pad8 = ((M + 7) // 8) * 8
    tm = min(tm, m_pad8)
    M_pad = ((M + tm - 1) // tm) * tm
    if M_pad != M:
        x = jnp.pad(x, ((0, M_pad - M), (0, 0)))
    out = pl.pallas_call(
        _matmul_bias_kernel,
        grid=(M_pad // tm,),
        out_shape=jax.ShapeDtypeStruct((M_pad, N), jnp.float32),
        in_specs=[
            pl.BlockSpec((tm, K), lambda i: (i, 0)),
            pl.BlockSpec((K, N), lambda i: (0, 0)),
            pl.BlockSpec((1, N), lambda i: (0, 0)),
        ],
        out_specs=pl.BlockSpec((tm, N), lambda i: (i, 0)),
        compiler_params=pltpu.CompilerParams(dimension_semantics=("parallel",)),
    )(x, w, b)
    return out[:M]


def _layer_norm(x, w, b, eps):
    mu = jnp.mean(x, axis=-1, keepdims=True)
    var = jnp.mean((x - mu) ** 2, axis=-1, keepdims=True)
    return (x - mu) * jax.lax.rsqrt(var + eps) * w + b


def _encoder_stack_kernel(
    x_ref,
    ln1w_ref, ln1b_ref,
    wq_ref, bq_ref, wk_ref, bk_ref, wv_ref, bv_ref,
    wproj_ref, bproj_ref,
    ln2w_ref, ln2b_ref,
    wfc1_ref, bfc1_ref, wfc2_ref, bfc2_ref,
    normw_ref, normb_ref,
    o_ref,
    acc_ref,
    *, num_heads, n_valid, eps,
):
    """Fused pre-norm ViT stack for one batch tile.

    Grid = (batch_tile, layer).  The (bb, N, D) activation lives in `acc_ref`
    (VMEM scratch) across the layer axis; every layer's weights are streamed
    in exactly once; the final LayerNorm is applied in the last-layer epilogue
    and written to `o_ref`.
    """
    layer = pl.program_id(1)
    bb, N, D = x_ref.shape
    H = num_heads
    hd = D // H
    G = H * bb
    scale = float(hd) ** -0.5

    @pl.when(layer == 0)
    def _():
        acc_ref[...] = x_ref[...]

    x = acc_ref[...]                              # (bb, N, D) resident activation

    def bcast_w(w):
        # (H, ...) per-head weight -> (H*bb, ...): leading-dim-only broadcast.
        return jnp.broadcast_to(
            w[:, None], (H, bb) + w.shape[1:]
        ).reshape((G,) + w.shape[1:])

    # --- attention branch (pre-norm) -------------------------------------
    xn = _layer_norm(x, ln1w_ref[...], ln1b_ref[...], eps)          # (bb, N, D)
    xg = jnp.broadcast_to(xn, (H, bb, N, D)).reshape(G, N, D)       # (G, N, D)

    q = jnp.einsum("gnd,gdk->gnk", xg, bcast_w(wq_ref[...]),
                   preferred_element_type=jnp.float32) + bcast_w(bq_ref[...])
    k = jnp.einsum("gnd,gdk->gnk", xg, bcast_w(wk_ref[...]),
                   preferred_element_type=jnp.float32) + bcast_w(bk_ref[...])
    v = jnp.einsum("gnd,gdk->gnk", xg, bcast_w(wv_ref[...]),
                   preferred_element_type=jnp.float32) + bcast_w(bv_ref[...])
    q = q * scale

    s = jnp.einsum("gnk,gmk->gnm", q, k, preferred_element_type=jnp.float32)
    if n_valid < N:  # mask padded key columns (static condition)
        col = jax.lax.broadcasted_iota(jnp.int32, (1, 1, N), 2)
        s = jnp.where(col < n_valid, s, -1e30)
    s = s - jnp.max(s, axis=-1, keepdims=True)
    p = jnp.exp(s)
    p = p * pl.reciprocal(jnp.sum(p, axis=-1, keepdims=True), approx=True)

    attn = jnp.einsum("gnm,gmk->gnk", p, v, preferred_element_type=jnp.float32)
    # per-head output projection; summing over heads == concat(heads) @ Wproj
    proj = jnp.einsum("gnk,gkd->gnd", attn, bcast_w(wproj_ref[...]),
                      preferred_element_type=jnp.float32)
    proj = jnp.sum(proj.reshape(H, bb, N, D), axis=0) + bproj_ref[...]
    x = x + proj

    # --- MLP branch (pre-norm) --------------------------------------------
    xn2 = _layer_norm(x, ln2w_ref[...], ln2b_ref[...], eps)
    w1 = jnp.broadcast_to(wfc1_ref[...], (bb,) + wfc1_ref.shape)
    w2 = jnp.broadcast_to(wfc2_ref[...], (bb,) + wfc2_ref.shape)
    h1 = jnp.einsum("bnd,bdk->bnk", xn2, w1,
                    preferred_element_type=jnp.float32) + bfc1_ref[...]
    h1 = jax.nn.gelu(h1, approximate=False)       # erf form == torch.nn.GELU
    h2 = jnp.einsum("bnk,bkd->bnd", h1, w2,
                    preferred_element_type=jnp.float32) + bfc2_ref[...]
    y = x + h2

    acc_ref[...] = y

    @pl.when(layer == pl.num_programs(1) - 1)
    def _():
        o_ref[...] = _layer_norm(y, normw_ref[...], normb_ref[...], eps)


def encoder_blocks_apply(x, layers, norm_w, norm_b, *, num_heads, n_valid,
                         batch_tile=8):
    """x: (B, N_pad, D) f32.  Runs all transformer blocks + final LN in one call."""
    B, N, D = x.shape
    depth = layers["wq"].shape[0]

    bb = min(B, batch_tile)                 # whole (small) batch per grid step
    nbt = (B + bb - 1) // bb
    B_pad = nbt * bb
    if B_pad != B:
        x = jnp.pad(x, ((0, B_pad - B), (0, 0), (0, 0)))

    def lspec(arr):
        nd = arr.ndim
        return pl.BlockSpec((None,) + arr.shape[1:],
                            lambda bt, l, _nd=nd: (l,) + (0,) * (_nd - 1))

    layer_order = ["ln1_w", "ln1_b", "wq", "bq", "wk", "bk", "wv", "bv",
                   "wproj", "bproj", "ln2_w", "ln2_b",
                   "wfc1", "bfc1", "wfc2", "bfc2"]
    layer_args = [layers[k] for k in layer_order]

    in_specs = [pl.BlockSpec((bb, N, D), lambda bt, l: (bt, 0, 0))]
    in_specs += [lspec(a) for a in layer_args]
    in_specs += [pl.BlockSpec((1, D), lambda bt, l: (0, 0)),
                 pl.BlockSpec((1, D), lambda bt, l: (0, 0))]

    out = pl.pallas_call(
        functools.partial(_encoder_stack_kernel, num_heads=num_heads,
                          n_valid=n_valid, eps=1e-6),
        grid=(nbt, depth),
        out_shape=jax.ShapeDtypeStruct((B_pad, N, D), jnp.float32),
        in_specs=in_specs,
        out_specs=pl.BlockSpec((bb, N, D), lambda bt, l: (bt, 0, 0)),
        scratch_shapes=[pltpu.VMEM((bb, N, D), jnp.float32)],
        compiler_params=pltpu.CompilerParams(
            dimension_semantics=("parallel", "arbitrary")),
    )(x, *layer_args, norm_w, norm_b)
    return out[:B]


# ----------------------------------------------------------------------------
# Plain-JAX / numpy glue (reshapes, index bookkeeping, parameter init)
# ----------------------------------------------------------------------------
def extract_patches_3d(x, t_patch, s_patch):
    """NCTHW -> (B, t_grid*h_grid*w_grid, C*t_patch*s_patch*s_patch).

    Matches Conv3d(kernel=stride=(t_patch,s_patch,s_patch)) + flatten token
    ordering (time-major, then row-major space).
    """
    B, C, T, H, W = x.shape
    tg, hg, wg = T // t_patch, H // s_patch, W // s_patch
    x = x.reshape(B, C, tg, t_patch, hg, s_patch, wg, s_patch)
    x = x.transpose(0, 2, 4, 6, 1, 3, 5, 7)          # B, t, h, w, C, tp, ph, pw
    return x.reshape(B, tg * hg * wg, C * t_patch * s_patch * s_patch), (tg, hg, wg)


def get_rec_indices_np(mask_np, patch_size):
    """Host-side equivalent of _get_rec_indices (data-dependent shape)."""
    H, W = mask_np.shape
    nh, nw = H // patch_size, W // patch_size
    rm = mask_np.reshape(nh, patch_size, nw, patch_size)
    minv = rm.min(axis=(1, 3))
    idx = np.argwhere(minv == 0)
    return (idx[:, 0] * nw + idx[:, 1]).astype(np.int64)


def init_encoder_params(key, *, img_size, channels, time_win, s_patch, t_patch,
                        depth, num_heads, embed_dim, mlp_ratio):
    H, W = img_size
    tg = time_win // t_patch
    num_patches = tg * (H // s_patch) * (W // s_patch)
    mlp_hidden = int(embed_dim * mlp_ratio)
    hd = embed_dim // num_heads

    k_obs = channels * t_patch * s_patch * s_patch
    k_mask = 1 * 1 * s_patch * s_patch   # TODO(synk): mask PatchEmbed uses frames=1,
    # so the temporal kernel is taken as 1 (the provided source of PatchEmbed is
    # not available; t_patch_size=2 on a single frame would be ill-formed).

    keys = iter(jax.random.split(key, 32))
    std = 0.02

    def w(shape):
        return (std * jax.random.normal(next(keys), shape)).astype(jnp.float32)

    params = {
        "patch_w": w((k_obs, embed_dim)),
        "patch_b": w((1, embed_dim)),
        "mask_w": w((k_mask, embed_dim)),
        "mask_b": w((1, embed_dim)),
        # pos_embed is a zero, non-trainable parameter in __init__
        "pos_embed": jnp.zeros((1, num_patches, embed_dim), jnp.float32),
        "norm_w": jnp.ones((1, embed_dim), jnp.float32),
        "norm_b": jnp.zeros((1, embed_dim), jnp.float32),
        # All block weights are stacked along a leading "layer" axis and the
        # attention weights stored per-head (equivalent to slicing a fused
        # wqkv / wproj along the feature axis — no lane slicing in-kernel).
        "layers": {
            "ln1_w": jnp.ones((depth, 1, embed_dim), jnp.float32),
            "ln1_b": jnp.zeros((depth, 1, embed_dim), jnp.float32),
            "wq": w((depth, num_heads, embed_dim, hd)),
            "bq": w((depth, num_heads, 1, hd)),
            "wk": w((depth, num_heads, embed_dim, hd)),
            "bk": w((depth, num_heads, 1, hd)),
            "wv": w((depth, num_heads, embed_dim, hd)),
            "bv": w((depth, num_heads, 1, hd)),
            "wproj": w((depth, num_heads, hd, embed_dim)),
            "bproj": w((depth, 1, embed_dim)),
            "ln2_w": jnp.ones((depth, 1, embed_dim), jnp.float32),
            "ln2_b": jnp.zeros((depth, 1, embed_dim), jnp.float32),
            "wfc1": w((depth, embed_dim, mlp_hidden)),
            "bfc1": w((depth, 1, mlp_hidden)),
            "wfc2": w((depth, mlp_hidden, embed_dim)),
            "bfc2": w((depth, 1, embed_dim)),
        },
    }
    return params


def encoder_forward(observation, mask_np, params, *, s_patch, t_patch, num_heads):
    """Reproduces Encoder.forward: returns (toks_context, toks_rec, ids_restore)."""
    B = observation.shape[0]
    D = params["patch_w"].shape[1]

    # ---- patch_embed(observation) -> (B, num_patches, D) --------------------
    patches, (tg, hg, wg) = extract_patches_3d(observation, t_patch, s_patch)
    num_patches_t = tg
    num_patches_s = hg * wg
    num_patches = num_patches_t * num_patches_s
    toks_all = matmul_bias(
        patches.reshape(B * num_patches, -1).astype(jnp.float32),
        params["patch_w"], params["patch_b"],
    ).reshape(B, num_patches, D)

    # ---- mask_embed(mask.view(1,1,1,H,W)) -> (1, num_patches_s, D) ----------
    mask5d = jnp.asarray(mask_np, jnp.float32)[None, None, None, :, :]
    mask_patches, _ = extract_patches_3d(mask5d, 1, s_patch)
    toks_mask = matmul_bias(
        mask_patches.reshape(num_patches_s, -1),
        params["mask_w"], params["mask_b"],
    ).reshape(1, num_patches_s, D)

    # ---- contextual mask injection (index bookkeeping on host) --------------
    ids_rec_mask = get_rec_indices_np(np.asarray(mask_np), s_patch)
    ids_rec = ids_rec_mask + (num_patches_t // 2) * num_patches_s

    upd = jnp.broadcast_to(toks_mask[:, ids_rec_mask, :], (B, len(ids_rec), D))
    toks_all = toks_all.at[:, ids_rec, :].add(upd)
    toks_all = toks_all + params["pos_embed"]

    ids_all = np.arange(num_patches, dtype=np.int64)
    ids_context = ids_all[~np.isin(ids_all, ids_rec)]
    toks_context = toks_all[:, ids_context, :]
    toks_rec = toks_all[:, ids_rec, :]

    ids_shuffle = np.concatenate([ids_context, ids_rec])
    ids_restore = np.argsort(ids_shuffle)
    ids_restore = jnp.asarray(np.broadcast_to(ids_restore, (B, num_patches)),
                              dtype=jnp.int32)

    # ---- fused transformer stack + final norm (single Pallas call) ----------
    n_ctx = toks_context.shape[1]
    n_pad = ((n_ctx + 7) // 8) * 8           # sublane-align token count
    if n_pad != n_ctx:
        toks_context = jnp.pad(toks_context,
                               ((0, 0), (0, n_pad - n_ctx), (0, 0)))
    toks_context = encoder_blocks_apply(
        toks_context, params["layers"], params["norm_w"], params["norm_b"],
        num_heads=num_heads, n_valid=n_ctx,
    )[:, :n_ctx, :]

    return toks_context, toks_rec, ids_restore


# ----------------------------------------------------------------------------
# Main
# ----------------------------------------------------------------------------
if __name__ == "__main__":
    # Small config consistent with the module's constructor.
    img_size = (16, 16)
    channels = 2
    time_win = 4
    s_patch = 4
    t_patch = 2
    depth = 2
    num_heads = 2
    embed_dim = 32
    mlp_ratio = 4.0
    B = 2

    key = jax.random.PRNGKey(0)
    k_par, k_obs = jax.random.split(key)

    params = init_encoder_params(
        k_par, img_size=img_size, channels=channels, time_win=time_win,
        s_patch=s_patch, t_patch=t_patch, depth=depth, num_heads=num_heads,
        embed_dim=embed_dim, mlp_ratio=mlp_ratio,
    )

    observation = jax.random.normal(
        k_obs, (B, channels, time_win, img_size[0], img_size[1]), dtype=jnp.float32
    )

    # Binary mask: 0 marks patches to reconstruct (4 fully-masked 4x4 patches).
    mask_np = np.ones(img_size, dtype=np.float32)
    for (ph, pw) in [(0, 0), (1, 2), (2, 3), (3, 1)]:
        mask_np[ph * s_patch:(ph + 1) * s_patch, pw * s_patch:(pw + 1) * s_patch] = 0.0

    toks_context, toks_rec, ids_restore = encoder_forward(
        observation, mask_np, params,
        s_patch=s_patch, t_patch=t_patch, num_heads=num_heads,
    )
    jax.block_until_ready((toks_context, toks_rec, ids_restore))

    assert toks_context.shape == (B, 32 - 4, embed_dim)
    assert toks_rec.shape == (B, 4, embed_dim)
    assert ids_restore.shape == (B, 32)
    assert bool(jnp.all(jnp.isfinite(toks_context)))
    print("KERNEL_OK")
</pallas_src>

<mosaic_0001>
module attributes {stable_mosaic.version = 11 : i64} {
  func.func @_matmul_bias_kernel(%arg0: i32, %arg1: memref<64x64xf32, #tpu.memory_space<vmem>>, %arg2: memref<64x32xf32, #tpu.memory_space<vmem>>, %arg3: memref<1x32xf32, #tpu.memory_space<vmem>>, %arg4: memref<64x32xf32, #tpu.memory_space<vmem>>) attributes {dimension_semantics = [#tpu.dimension_semantics<parallel>], iteration_bounds = array<i64: 1>, scalar_prefetch = 0 : i64, scratch_operands = 0 : i64, tpu.core_type = #tpu.core_type<tc>, window_params = [{transform_indices = @transform_0, window_bounds = array<i64: 64, 64>}, {pipeline_mode = #tpu.pipeline_mode<synchronous>, transform_indices = @transform_1, window_bounds = array<i64: 64, 32>}, {pipeline_mode = #tpu.pipeline_mode<synchronous>, transform_indices = @transform_2, window_bounds = array<i64: 1, 32>}, {transform_indices = @transform_3, window_bounds = array<i64: 64, 32>}]} {
    %c0 = arith.constant 0 : index
    %c0_0 = arith.constant 0 : index
    %0 = vector.load %arg1[%c0, %c0_0] : memref<64x64xf32, #tpu.memory_space<vmem>>, vector<64x64xf32>
    %c0_1 = arith.constant 0 : index
    %c0_2 = arith.constant 0 : index
    %1 = vector.load %arg2[%c0_1, %c0_2] : memref<64x32xf32, #tpu.memory_space<vmem>>, vector<64x32xf32>
    %cst = arith.constant dense<0.000000e+00> : vector<64x32xf32>
    %2 = tpu.matmul %0, %1, %cst {dimension_numbers = #tpu.dot_dimension_numbers<[1], [0], [0], [1], [0, 0, 1, 1], [], []>} : vector<64x64xf32>, vector<64x32xf32>, vector<64x32xf32> -> vector<64x32xf32>
    %c0_3 = arith.constant 0 : index
    %c0_4 = arith.constant 0 : index
    %3 = vector.load %arg3[%c0_3, %c0_4] : memref<1x32xf32, #tpu.memory_space<vmem>>, vector<1x32xf32>
    %4 = vector.broadcast %3 : vector<1x32xf32> to vector<64x32xf32>
    %5 = arith.addf %2, %4 : vector<64x32xf32>
    %c0_5 = arith.constant 0 : index
    %c0_6 = arith.constant 0 : index
    %6 = vector.load %arg4[%c0_5, %c0_6] : memref<64x32xf32, #tpu.memory_space<vmem>>, vector<64x32xf32>
    tpu.vector_store %arg4[%c0_5, %c0_6], %5 {strides = array<i32>} : memref<64x32xf32, #tpu.memory_space<vmem>>, vector<64x32xf32>,
    return
  }
  func.func @transform_0(%arg0: i32) -> (i32, i32) {
    %c0_i32 = arith.constant 0 : i32
    %c0_i32_0 = arith.constant 0 : i32
    return %arg0, %c0_i32 : i32, i32
  }
  func.func @transform_1(%arg0: i32) -> (i32, i32) {
    %c0_i32 = arith.constant 0 : i32
    %c0_i32_0 = arith.constant 0 : i32
    %c0_i32_1 = arith.constant 0 : i32
    return %c0_i32, %c0_i32_0 : i32, i32
  }
  func.func @transform_2(%arg0: i32) -> (i32, i32) {
    %c0_i32 = arith.constant 0 : i32
    %c0_i32_0 = arith.constant 0 : i32
    %c0_i32_1 = arith.constant 0 : i32
    return %c0_i32, %c0_i32_0 : i32, i32
  }
  func.func @transform_3(%arg0: i32) -> (i32, i32) {
    %c0_i32 = arith.constant 0 : i32
    %c0_i32_0 = arith.constant 0 : i32
    return %arg0, %c0_i32 : i32, i32
  }
}

</mosaic_0001>

<llo_original>
// kernel: tpu_custom_call.1
$region0: #{tpu_custom_call.1}
  #allocation0 [shape = 'u32[]', space=smem, size = 0x4, offset = 0x4, fixed_abs, tag = 'smem constant byte address 0x4 - core index']
  #allocation1 [shape = 'u32[144,128]{1,0:T(1,128)}', space=vmem, size = 0x12000, scoped, tag = 'internal scratch']
  %s0 = inlined_call_operand.vmem [shape: f32[64,64], index: 0, kind: input, shape index: {}]
  %s1 = inlined_call_operand.vmem [shape: f32[64,32], index: 1, kind: input, shape index: {}]
  %s2 = inlined_call_operand.vmem [shape: f32[1,32], index: 2, kind: input, shape index: {}]
  %s3 = inlined_call_operand.vmem [shape: f32[64,32], index: 3, kind: output, shape index: {}]
  %s4 = sld [smem:[#allocation0]]
  $region22: #{tpu_custom_call.1} parent=0
    _
  %s6 = ssub.s32 1, %s4
  %s7 = scalar_select 0, %s6, %s4
  // Predicated region
  $region2: #{tpu_custom_call.1} parent=0 // pred_check
    _
  $region3: #{tpu_custom_call.1} parent=0 // pred_check_branch
    %9 = sbr.rel (0) target = $region5
  $region4: #{tpu_custom_call.1} parent=0 // pred_region
    _
  $region5: #{tpu_custom_call.1} parent=0 // pred_fallthru
    _
  // Predicated region
  $region6: #{tpu_custom_call.1} parent=0 // pred_check
    _
  $region7: #{tpu_custom_call.1} parent=0 // pred_check_branch
    %11 = sbr.rel (0) target = $region9
  $region8: #{tpu_custom_call.1} parent=0 // pred_region
    _
  $region9: #{tpu_custom_call.1} parent=0 // pred_fallthru
    _
  // Predicated region
  $region10: #{tpu_custom_call.1} parent=0 // pred_check
    _
  $region11: #{tpu_custom_call.1} parent=0 // pred_check_branch
    %13 = sbr.rel (0) target = $region13
  $region12: #{tpu_custom_call.1} parent=0 // pred_region
    _
  $region13: #{tpu_custom_call.1} parent=0 // pred_fallthru
    _
  %v14 = vld [vmem:[%s0] sm:$0xff]
  %v15 = vld [vmem:[%s0 + $0x8] sm:$0xff]
  %v16 = vld [vmem:[%s0 + $0x10] sm:$0xff]
  %v17 = vld [vmem:[%s0 + $0x18] sm:$0xff]
  %v18 = vld [vmem:[%s0 + $0x20] sm:$0xff]
  %v19 = vld [vmem:[%s0 + $0x28] sm:$0xff]
  %v20 = vld [vmem:[%s0 + $0x30] sm:$0xff]
  %v21 = vld [vmem:[%s0 + $0x38] sm:$0xff]
  %v22 = vld [vmem:[%s1] sm:$0xff]
  %v23 = vld [vmem:[%s1 + $0x8] sm:$0xff]
  %v24 = vld [vmem:[%s1 + $0x10] sm:$0xff]
  %v25 = vld [vmem:[%s1 + $0x18] sm:$0xff]
  %v26 = vld [vmem:[%s1 + $0x20] sm:$0xff]
  %v27 = vld [vmem:[%s1 + $0x28] sm:$0xff]
  %v28 = vld [vmem:[%s1 + $0x30] sm:$0xff]
  %v29 = vld [vmem:[%s1 + $0x38] sm:$0xff]
  %v30 = vld [vmem:[%s2] sm:$0x1]
  %v32 = vlaneseq
  %v33 = vshrl.u32 %v32, 7
  %v34 = vsub.s32 0, %v33
  %v35 = vrot.slane %v30, %v34
  %vm37 = vcmask 523264
  %v39 = vsel %vm37, %v14, 0
  %v42 = vsel %vm37, %v15, 0
  %v45 = vsel %vm37, %v16, 0
  %v48 = vsel %vm37, %v17, 0
  %v51 = vsel %vm37, %v18, 0
  %v54 = vsel %vm37, %v19, 0
  %v57 = vsel %vm37, %v20, 0
  %v60 = vsel %vm37, %v21, 0
  %62 = vmatprep.subr.mxu0 0.0
  %63 = vmatpush1.msra.mxu0 %v22
  %64 = vmatprep.subr.mxu0 0.0
  %65 = vmatpush1.msra.mxu0 %v23
  %66 = vmatprep.subr.mxu0 0.0
  %67 = vmatpush1.msra.mxu0 %v24
  %68 = vmatprep.subr.mxu0 0.0
  %69 = vmatpush1.msra.mxu0 %v25
  %70 = vmatprep.subr.mxu0 0.0
  %71 = vmatpush1.msra.mxu0 %v26
  %72 = vmatprep.subr.mxu0 0.0
  %73 = vmatpush1.msra.mxu0 %v27
  %74 = vmatprep.subr.mxu0 0.0
  %75 = vmatpush1.msra.mxu0 %v28
  %76 = vmatprep.subr.mxu0 0.0
  %77 = vmatpush1.msra.mxu0 %v29
  %78 = vmatprep.subr.mxu0 0.0
  %79 = vmatpush1.msra.mxu0 0.0
  %80 = vmatprep.subr.mxu0 0.0
  %81 = vmatpush1.msra.mxu0 0.0
  %82 = vmatprep.subr.mxu0 0.0
  %83 = vmatpush1.msra.mxu0 0.0
  %84 = vmatprep.subr.mxu0 0.0
  %85 = vmatpush1.msra.mxu0 0.0
  %86 = vmatprep.subr.mxu0 0.0
  %87 = vmatpush1.msra.mxu0 0.0
  %88 = vmatprep.subr.mxu0 0.0
  %89 = vmatpush1.msra.mxu0 0.0
  %90 = vmatprep.subr.mxu0 0.0
  %91 = vmatpush1.msra.mxu0 0.0
  %92 = vmatprep.subr.mxu0 0.0
  %93 = vmatpush1.msra.mxu0 0.0
  %94 = vmatprep.subr.mxu0 0.0
  %95 = vmatpush1.msra.mxu0 0.0
  %96 = vmatprep.subr.mxu0 0.0
  %97 = vmatpush1.msra.mxu0 0.0
  %98 = vmatprep.subr.mxu0 0.0
  %99 = vmatpush1.msra.mxu0 0.0
  %100 = vmatprep.subr.mxu0 0.0
  %101 = vmatpush1.msra.mxu0 0.0
  %102 = vmatprep.subr.mxu0 0.0
  %103 = vmatpush1.msra.mxu0 0.0
  %104 = vmatprep.subr.mxu0 0.0
  %105 = vmatpush1.msra.mxu0 0.0
  %106 = vmatprep.subr.mxu0 0.0
  %107 = vmatpush1.msra.mxu0 0.0
  %108 = vmatprep.subr.mxu0 0.0
  %109 = vmatpush1.msra.mxu0 0.0
  %110 = vmatprep.subr.mxu0 0.0
  %111 = vmatpush1.msra.mxu0 0.0
  %112 = vmatprep.subr.mxu0 0.0
  %113 = vmatpush1.msra.mxu0 0.0
  %114 = vmatprep.subr.mxu0 0.0
  %115 = vmatpush1.msra.mxu0 0.0
  %116 = vmatprep.subr.mxu0 0.0
  %117 = vmatpush1.msra.mxu0 0.0
  %118 = vmatprep.subr.mxu0 0.0
  %119 = vmatpush1.msra.mxu0 0.0
  %120 = vmatprep.subr.mxu0 0.0
  %121 = vmatpush1.msra.mxu0 0.0
  %122 = vmatprep.subr.mxu0 0.0
  %123 = vmatpush1.msra.mxu0 0.0
  %124 = vmatprep.subr.mxu0 0.0
  %125 = vmatpush1.msra.mxu0 0.0
  %126 = vmatprep.mubr.f32.mxu0 0.0
  %127 = vmatmul.mubr.f32.gmra.mrb[0].mxu0 %v39
  %v128 = vpop.f32.mrb[0].mxu0
  %v129 = vadd.f32 %v35, %v128
  %v130 = vpop.f32.mrb[0].mxu0
  %131 = vmatprep.mubr.f32.mxu0 0.0
  %132 = vmatmul.mubr.f32.gmra.mrb[0].mxu0 %v42
  %v133 = vpop.f32.mrb[0].mxu0
  %v134 = vadd.f32 %v35, %v133
  %v135 = vpop.f32.mrb[0].mxu0
  %136 = vmatprep.mubr.f32.mxu0 0.0
  %137 = vmatmul.mubr.f32.gmra.mrb[0].mxu0 %v45
  %v138 = vpop.f32.mrb[0].mxu0
  %v139 = vadd.f32 %v35, %v138
  %v140 = vpop.f32.mrb[0].mxu0
  %141 = vmatprep.mubr.f32.mxu0 0.0
  %142 = vmatmul.mubr.f32.gmra.mrb[0].mxu0 %v48
  %v143 = vpop.f32.mrb[0].mxu0
  %v144 = vadd.f32 %v35, %v143
  %v145 = vpop.f32.mrb[0].mxu0
  %146 = vmatprep.mubr.f32.mxu0 0.0
  %147 = vmatmul.mubr.f32.gmra.mrb[0].mxu0 %v51
  %v148 = vpop.f32.mrb[0].mxu0
  %v149 = vadd.f32 %v35, %v148
  %v150 = vpop.f32.mrb[0].mxu0
  %151 = vmatprep.mubr.f32.mxu0 0.0
  %152 = vmatmul.mubr.f32.gmra.mrb[0].mxu0 %v54
  %v153 = vpop.f32.mrb[0].mxu0
  %v154 = vadd.f32 %v35, %v153
  %v155 = vpop.f32.mrb[0].mxu0
  %156 = vmatprep.mubr.f32.mxu0 0.0
  %157 = vmatmul.mubr.f32.gmra.mrb[0].mxu0 %v57
  %v158 = vpop.f32.mrb[0].mxu0
  %v159 = vadd.f32 %v35, %v158
  %v160 = vpop.f32.mrb[0].mxu0
  %161 = vmatprep.mubr.f32.mxu0 0.0
  %162 = vmatmul.mubr.f32.gmra.mrb[0].mxu0 %v60
  %v163 = vpop.f32.mrb[0].mxu0
  %v164 = vadd.f32 %v35, %v163
  %v165 = vpop.f32.mrb[0].mxu0
  %166 = vdwg.mxu0
  %vm167 = vcmask 261120
  %168 = vst.msk [vmem:[%s3] sm:$0xff] %vm167, %v129
  %169 = vst.msk [vmem:[%s3 + $0x8] sm:$0xff] %vm167, %v134
  %170 = vst.msk [vmem:[%s3 + $0x10] sm:$0xff] %vm167, %v139
  %171 = vst.msk [vmem:[%s3 + $0x18] sm:$0xff] %vm167, %v144
  %172 = vst.msk [vmem:[%s3 + $0x20] sm:$0xff] %vm167, %v149
  %173 = vst.msk [vmem:[%s3 + $0x28] sm:$0xff] %vm167, %v154
  %174 = vst.msk [vmem:[%s3 + $0x30] sm:$0xff] %vm167, %v159
  %175 = vst.msk [vmem:[%s3 + $0x38] sm:$0xff] %vm167, %v164
  // Predicated region
  $region14: #{tpu_custom_call.1} parent=0 // pred_check
    _
  $region15: #{tpu_custom_call.1} parent=0 // pred_check_branch
    %177 = sbr.rel (0) target = $region17
  $region16: #{tpu_custom_call.1} parent=0 // pred_region
    _
  $region17: #{tpu_custom_call.1} parent=0 // pred_fallthru
    _
  // Predicated region
  $region18: #{tpu_custom_call.1} parent=0 // pred_check
    _
  $region19: #{tpu_custom_call.1} parent=0 // pred_check_branch
    %179 = sbr.rel (0) target = $region21
  $region20: #{tpu_custom_call.1} parent=0 // pred_region
    _
  $region21: #{tpu_custom_call.1} parent=0 // pred_fallthru
    _

</llo_original>
